<compile_context>
chip_gen: v5e
topology: v5e:2x2
jax: 0.10.0
libtpu: 0.0.40
codegen_flags: <defaults>
</compile_context>

<pallas_src>
import functools

import jax
import jax.numpy as jnp
from jax.experimental import pallas as pl
from jax.experimental.pallas import tpu as pltpu

_LANES = 128
_MIN_SLAB = 8 * _LANES          # (8, 128) f32 vreg granule
_DEFAULT_TILE_ROWS = 512        # 512*128*4B = 256 KiB per f32 block


def _if_step_kernel(x_ref, v_ref, out_ref, v_new_ref, *,
                    scale, v_th, first_step, apply_scale):
    """One IF-neuron step on a (TILE_R, 128) tile (pure VPU elementwise)."""
    v = v_ref[...]

    if first_step:
        # t == 0 pre-charge: neuron(0.5 * ones) with soft reset.
        charged = v + jnp.float32(0.5)
        s0 = (charged >= v_th).astype(jnp.float32)
        v = charged - s0 * jnp.float32(v_th)

    x = x_ref[...].astype(jnp.float32)
    if apply_scale:
        x = x * jnp.float32(1.0 / scale)

    v = v + x
    spike = (v >= v_th).astype(jnp.float32)
    v_new_ref[...] = v - spike * jnp.float32(v_th)      # soft reset (v_reset=None)

    if apply_scale:
        spike = spike * jnp.float32(scale)
    out_ref[...] = spike.astype(out_ref.dtype)


def _slab_rows(n):
    """Rows of the (R, 128) slab for n elements (R is a multiple of 8)."""
    padded = ((n + _MIN_SLAB - 1) // _MIN_SLAB) * _MIN_SLAB
    return padded // _LANES, padded - n


def init_state(x_shape):
    """Fresh membrane-potential state in slab layout (R, 128) f32."""
    n = 1
    for d in x_shape:
        n *= d
    rows, _ = _slab_rows(n)
    return jnp.zeros((rows, _LANES), jnp.float32)


def if_neuron_step(x, v_slab, t, *, scale=1.0, v_th=1.0,
                   tile_rows=_DEFAULT_TILE_ROWS):
    """One forward call of IFNeuron.

    x      : input, arbitrary shape (e.g. NCHW), any float dtype.
    v_slab : membrane potential in slab layout (R, 128) f32 (from init_state),
             carried across timesteps.
    t      : python int time step (state; start with 0).
    Returns (spike_out with x's shape/dtype, new v_slab).
    """
    orig_shape = x.shape
    orig_dtype = x.dtype
    n = x.size
    rows, pad = _slab_rows(n)

    flat = x.reshape(-1)
    if pad:
        flat = jnp.pad(flat, (0, pad))          # only for odd sizes; demo is pad-free
    x2d = flat.reshape(rows, _LANES)

    assert v_slab.shape == (rows, _LANES) and v_slab.dtype == jnp.float32

    tile_r = min(int(tile_rows), rows)          # multiple of 8 since rows % 8 == 0
    grid = (pl.cdiv(rows, tile_r),)
    blk = lambda i: (i, 0)

    kernel = functools.partial(
        _if_step_kernel,
        scale=float(scale), v_th=float(v_th),
        first_step=(t == 0),
        apply_scale=(float(scale) != 1.0),
    )

    out2d, v_new = pl.pallas_call(
        kernel,
        out_shape=(
            jax.ShapeDtypeStruct((rows, _LANES), orig_dtype),
            jax.ShapeDtypeStruct((rows, _LANES), jnp.float32),
        ),
        grid=grid,
        in_specs=[
            pl.BlockSpec((tile_r, _LANES), blk),   # x slab
            pl.BlockSpec((tile_r, _LANES), blk),   # v slab (state in)
        ],
        out_specs=(
            pl.BlockSpec((tile_r, _LANES), blk),   # spike out
            pl.BlockSpec((tile_r, _LANES), blk),   # v slab (state out)
        ),
        input_output_aliases={1: 1},               # update membrane state in place
        compiler_params=pltpu.CompilerParams(
            dimension_semantics=("parallel",)),
    )(x2d, v_slab)

    if pad:
        out = out2d.reshape(-1)[:n].reshape(orig_shape)
    else:
        out = out2d.reshape(orig_shape)            # free reshape, no copy
    return out, v_new


def _ref_step(x, v, t, *, scale=1.0, v_th=1.0):
    """Plain-JAX reference of the same semantics (for verification)."""
    x = x.astype(jnp.float32)
    if t == 0:
        v = v + 0.5
        s0 = (v >= v_th).astype(jnp.float32)
        v = v - s0 * v_th
    v = v + x / scale
    spike = (v >= v_th).astype(jnp.float32)
    v = v - spike * v_th
    return spike * scale, v


if __name__ == "__main__":
    key = jax.random.PRNGKey(0)
    B, C, H, W = 2, 4, 16, 16                 # NCHW, matches conv-style inputs
    shape = (B, C, H, W)

    x0 = jax.random.normal(key, shape, dtype=jnp.float32)
    x1 = jax.random.normal(jax.random.fold_in(key, 1), shape, dtype=jnp.float32)

    for scale in (1.0, 0.25):
        # Pallas: state kept in slab layout across timesteps.
        v_slab = init_state(shape)
        out0, v_slab = if_neuron_step(x0, v_slab, 0, scale=scale)
        out1, v_slab = if_neuron_step(x1, v_slab, 1, scale=scale)
        jax.block_until_ready((out0, out1, v_slab))

        # Reference in original layout.
        rv = jnp.zeros(shape, jnp.float32)
        r0, rv = _ref_step(x0, rv, 0, scale=scale)
        r1, rv = _ref_step(x1, rv, 1, scale=scale)

        n = x0.size
        v_back = v_slab.reshape(-1)[:n].reshape(shape)

        assert out0.shape == shape and out0.dtype == x0.dtype
        assert jnp.allclose(out0, r0, atol=1e-6), f"spike t=0 mismatch (scale={scale})"
        assert jnp.allclose(out1, r1, atol=1e-6), f"spike t=1 mismatch (scale={scale})"
        assert jnp.allclose(v_back, rv, atol=1e-6), f"state mismatch (scale={scale})"

    print("KERNEL_OK")
</pallas_src>

<mosaic_0001>
module attributes {stable_mosaic.version = 11 : i64} {
  func.func @_if_step_kernel(%arg0: i32, %arg1: memref<16x128xf32, #tpu.memory_space<vmem>>, %arg2: memref<16x128xf32, #tpu.memory_space<vmem>>, %arg3: memref<16x128xf32, #tpu.memory_space<vmem>>, %arg4: memref<16x128xf32, #tpu.memory_space<vmem>>) attributes {dimension_semantics = [#tpu.dimension_semantics<parallel>], iteration_bounds = array<i64: 1>, scalar_prefetch = 0 : i64, scratch_operands = 0 : i64, tpu.core_type = #tpu.core_type<tc>, window_params = [{transform_indices = @transform_0, window_bounds = array<i64: 16, 128>}, {transform_indices = @transform_1, window_bounds = array<i64: 16, 128>}, {transform_indices = @transform_2, window_bounds = array<i64: 16, 128>}, {transform_indices = @transform_3, window_bounds = array<i64: 16, 128>}]} {
    %c0 = arith.constant 0 : index
    %c0_0 = arith.constant 0 : index
    %0 = vector.load %arg2[%c0, %c0_0] : memref<16x128xf32, #tpu.memory_space<vmem>>, vector<16x128xf32>
    %cst = arith.constant 5.000000e-01 : f32
    %1 = vector.broadcast %cst : f32 to vector<16x128xf32>
    %2 = arith.addf %0, %1 : vector<16x128xf32>
    %cst_1 = arith.constant 1.000000e+00 : f32
    %3 = vector.broadcast %cst_1 : f32 to vector<16x128xf32>
    %4 = arith.cmpf oge, %2, %3 : vector<16x128xf32>
    %5 = arith.extui %4 : vector<16x128xi1> to vector<16x128xi32>
    %6 = arith.sitofp %5 : vector<16x128xi32> to vector<16x128xf32>
    %cst_2 = arith.constant 1.000000e+00 : f32
    %7 = vector.broadcast %cst_2 : f32 to vector<16x128xf32>
    %8 = arith.mulf %6, %7 : vector<16x128xf32>
    %9 = arith.subf %2, %8 : vector<16x128xf32>
    %c0_3 = arith.constant 0 : index
    %c0_4 = arith.constant 0 : index
    %10 = vector.load %arg1[%c0_3, %c0_4] : memref<16x128xf32, #tpu.memory_space<vmem>>, vector<16x128xf32>
    %11 = arith.addf %9, %10 : vector<16x128xf32>
    %cst_5 = arith.constant 1.000000e+00 : f32
    %12 = vector.broadcast %cst_5 : f32 to vector<16x128xf32>
    %13 = arith.cmpf oge, %11, %12 : vector<16x128xf32>
    %14 = arith.extui %13 : vector<16x128xi1> to vector<16x128xi32>
    %15 = arith.sitofp %14 : vector<16x128xi32> to vector<16x128xf32>
    %cst_6 = arith.constant 1.000000e+00 : f32
    %16 = vector.broadcast %cst_6 : f32 to vector<16x128xf32>
    %17 = arith.mulf %15, %16 : vector<16x128xf32>
    %18 = arith.subf %11, %17 : vector<16x128xf32>
    %c0_7 = arith.constant 0 : index
    %c0_8 = arith.constant 0 : index
    %19 = vector.load %arg4[%c0_7, %c0_8] : memref<16x128xf32, #tpu.memory_space<vmem>>, vector<16x128xf32>
    tpu.vector_store %arg4[%c0_7, %c0_8], %18 {strides = array<i32>} : memref<16x128xf32, #tpu.memory_space<vmem>>, vector<16x128xf32>,
    %c0_9 = arith.constant 0 : index
    %c0_10 = arith.constant 0 : index
    %20 = vector.load %arg3[%c0_9, %c0_10] : memref<16x128xf32, #tpu.memory_space<vmem>>, vector<16x128xf32>
    tpu.vector_store %arg3[%c0_9, %c0_10], %15 {strides = array<i32>} : memref<16x128xf32, #tpu.memory_space<vmem>>, vector<16x128xf32>,
    return
  }
  func.func @transform_0(%arg0: i32) -> (i32, i32) {
    %c0_i32 = arith.constant 0 : i32
    %c0_i32_0 = arith.constant 0 : i32
    return %arg0, %c0_i32 : i32, i32
  }
  func.func @transform_1(%arg0: i32) -> (i32, i32) {
    %c0_i32 = arith.constant 0 : i32
    %c0_i32_0 = arith.constant 0 : i32
    return %arg0, %c0_i32 : i32, i32
  }
  func.func @transform_2(%arg0: i32) -> (i32, i32) {
    %c0_i32 = arith.constant 0 : i32
    %c0_i32_0 = arith.constant 0 : i32
    return %arg0, %c0_i32 : i32, i32
  }
  func.func @transform_3(%arg0: i32) -> (i32, i32) {
    %c0_i32 = arith.constant 0 : i32
    %c0_i32_0 = arith.constant 0 : i32
    return %arg0, %c0_i32 : i32, i32
  }
}

</mosaic_0001>

<llo_original>
// kernel: tpu_custom_call.1
$region0: #{tpu_custom_call.1}
  #allocation0 [shape = 'u32[]', space=smem, size = 0x4, offset = 0x4, fixed_abs, tag = 'smem constant byte address 0x4 - core index']
  #allocation1 [shape = 'u32[72,128]{1,0:T(1,128)}', space=vmem, size = 0x9000, scoped, tag = 'internal scratch']
  %s0 = inlined_call_operand.vmem [shape: f32[16,128], index: 0, kind: input, shape index: {}]
  %s1 = inlined_call_operand.hbm [shape: f32[16,128], index: 1, kind: input, shape index: {}, may-alias: {1,3}]
  %s2 = inlined_call_operand.hbm [shape: f32[16,128], index: 2, kind: output, shape index: {0}]
  %s3 = inlined_call_operand.hbm [shape: f32[16,128], index: 3, kind: output, shape index: {1}, may-alias: {1,3}]
  %4 = xla_tuple %s2, %s3
  %s5 = sld [smem:[#allocation0]]
  $region30: #{tpu_custom_call.1} parent=0
    _
  %s7 = ssub.s32 1, %s5
  %s8 = scalar_select 0, %s7, %s5
  $region1: #{tpu_custom_call.1} parent=0
    #allocation2 [shape = 'u8[8192]{0}', space=vmem, size = 0x2000, scoped, tag = 'input window, operand 1, single buffered']
    #allocation3 [shape = 's32[1]{0}', space=sflag, size = 0x4, scoped, tag = 'scoped memory for tpu_custom_call.1']
    #allocation4 [shape = 's32[1]{0}', space=sflag, size = 0x4, scoped, tag = 'scoped memory for tpu_custom_call.1']
    #allocation5 [shape = 'u8[8192]{0}', space=vmem, size = 0x2000, scoped, tag = 'output window, operand 0, single buffered']
    #allocation6 [shape = 'u8[8192]{0}', space=vmem, size = 0x2000, scoped, tag = 'output window, operand 1, single buffered']
    #allocation7 [shape = 's32[1]{0}', space=sflag, size = 0x4, scoped, tag = 'scoped memory for tpu_custom_call.1']
    %9 = vsyncpa [#allocation3], 0
    %10 = vsyncpa [#allocation4], 0
    %11 = vsyncpa [#allocation7], 0
    // Predicated region
    $region2: #{tpu_custom_call.1} parent=1 // pred_check
      _
    $region3: #{tpu_custom_call.1} parent=1 // pred_check_branch
      %13 = sbr.rel (0) target = $region5
    $region4: #{tpu_custom_call.1} parent=1 // pred_region
      _
    $region5: #{tpu_custom_call.1} parent=1 // pred_fallthru
      _
    // Predicated region
    $region6: #{tpu_custom_call.1} parent=1 // pred_check
      _
    $region7: #{tpu_custom_call.1} parent=1 // pred_check_branch
      %15 = sbr.rel (0) target = $region9
    $region8: #{tpu_custom_call.1} parent=1 // pred_region
      %17 = vsyncadd [#allocation3], 0
      %s18 = sshll.u32 %s1, 4
      %s19 = int_to_ptr.hbm [resolvable:$true] %s18
      %s20 = sshll.u32 [#allocation2], 4
      %s21 = int_to_ptr.vmem [resolvable:$true] %s20
      %26 = dma.hbm_to_vmem [thread:$0]  %s19, 256, %s21, [#allocation3], 128, 128, 8
    $region9: #{tpu_custom_call.1} parent=1 // pred_fallthru
      _
    // Predicated region
    $region10: #{tpu_custom_call.1} parent=1 // pred_check
      _
    $region11: #{tpu_custom_call.1} parent=1 // pred_check_branch
      %28 = sbr.rel (0) target = $region13
    $region12: #{tpu_custom_call.1} parent=1 // pred_region
      %30 = dma.done [#allocation3], 256
    $region13: #{tpu_custom_call.1} parent=1 // pred_fallthru
      _
    %v31 = vld [vmem:[#allocation2] sm:$0xff]
    %v32 = vld [vmem:[#allocation2 + $0x8] sm:$0xff]
    %v33 = vadd.f32 %v31, 0.5
    %v34 = vadd.f32 %v32, 0.5
    %vm35 = vcmp.ge.f32.partialorder %v33, 1.0
    %vm36 = vcmp.ge.f32.partialorder %v34, 1.0
    %v37 = vsel %vm35, 1, 0
    %v38 = vsel %vm36, 1, 0
    %v39 = vcvt.s32.f32 %v37
    %v40 = vcvt.s32.f32 %v38
    %v41 = vsub.f32 %v33, %v39
    %v42 = vsub.f32 %v34, %v40
    %v43 = vld [vmem:[%s0] sm:$0xff]
    %v44 = vld [vmem:[%s0 + $0x8] sm:$0xff]
    %v45 = vadd.f32 %v41, %v43
    %v46 = vadd.f32 %v42, %v44
    %vm47 = vcmp.ge.f32.partialorder %v45, 1.0
    %vm48 = vcmp.ge.f32.partialorder %v46, 1.0
    %v49 = vsel %vm47, 1, 0
    %v50 = vsel %vm48, 1, 0
    %v51 = vcvt.s32.f32 %v49
    %v52 = vcvt.s32.f32 %v50
    %v53 = vsub.f32 %v45, %v51
    %v54 = vsub.f32 %v46, %v52
    %55 = vst [vmem:[#allocation6] sm:$0xff] %v53
    %56 = vst [vmem:[#allocation6 + $0x8] sm:$0xff] %v54
    %57 = vst [vmem:[#allocation5] sm:$0xff] %v51
    %58 = vst [vmem:[#allocation5 + $0x8] sm:$0xff] %v52
    // Predicated region
    $region14: #{tpu_custom_call.1} parent=1 // pred_check
      _
    $region15: #{tpu_custom_call.1} parent=1 // pred_check_branch
      %60 = sbr.rel (0) target = $region17
    $region16: #{tpu_custom_call.1} parent=1 // pred_region
      %62 = vsyncadd [#allocation4], 0
      %s63 = sshll.u32 [#allocation5], 4
      %s64 = int_to_ptr.vmem [resolvable:$true] %s63
      %s65 = sshll.u32 %s2, 4
      %s66 = int_to_ptr.hbm [resolvable:$true] %s65
      %71 = dma.vmem_to_hbm [thread:$0]  %s64, 256, %s66, [#allocation4], 128, 128, 8
    $region17: #{tpu_custom_call.1} parent=1 // pred_fallthru
      _
    // Predicated region
    $region18: #{tpu_custom_call.1} parent=1 // pred_check
      _
    $region19: #{tpu_custom_call.1} parent=1 // pred_check_branch
      %73 = sbr.rel (0) target = $region21
    $region20: #{tpu_custom_call.1} parent=1 // pred_region
      %75 = vsyncadd [#allocation7], 0
      %s76 = sshll.u32 [#allocation6], 4
      %s77 = int_to_ptr.vmem [resolvable:$true] %s76
      %s78 = sshll.u32 %s3, 4
      %s79 = int_to_ptr.hbm [resolvable:$true] %s78
      %84 = dma.vmem_to_hbm [thread:$0]  %s77, 256, %s79, [#allocation7], 128, 128, 8
    $region21: #{tpu_custom_call.1} parent=1 // pred_fallthru
      _
    // Predicated region
    $region22: #{tpu_custom_call.1} parent=1 // pred_check
      _
    $region23: #{tpu_custom_call.1} parent=1 // pred_check_branch
      %86 = sbr.rel (0) target = $region25
    $region24: #{tpu_custom_call.1} parent=1 // pred_region
      %88 = dma.done [#allocation4], 256
    $region25: #{tpu_custom_call.1} parent=1 // pred_fallthru
      _
    // Predicated region
    $region26: #{tpu_custom_call.1} parent=1 // pred_check
      _
    $region27: #{tpu_custom_call.1} parent=1 // pred_check_branch
      %90 = sbr.rel (0) target = $region29
    $region28: #{tpu_custom_call.1} parent=1 // pred_region
      %92 = dma.done [#allocation7], 256
    $region29: #{tpu_custom_call.1} parent=1 // pred_fallthru
      _
    %93 = vsyncpa [#allocation3], 1
    %94 = vsyncpa [#allocation4], 1
    %95 = vsyncpa [#allocation7], 1

</llo_original>
